<compile_context>
chip_gen: v7x
topology: tpu7x:2x2x1
jax: 0.10.0
libtpu: 0.0.40
codegen_flags: <defaults>
</compile_context>

<pallas_src>
import functools

import jax
import jax.numpy as jnp
from jax.experimental import pallas as pl
from jax.experimental.pallas import tpu as pltpu


# ---------------------------------------------------------------------------
# Chip-aware configuration
# ---------------------------------------------------------------------------

def _tpu_generation():
    """Best-effort TPU generation (4/5/6/7); 0 if unknown / not a TPU."""
    try:
        dev = jax.devices()[0]
        if dev.platform != "tpu":
            return 0
        kind = dev.device_kind.lower().replace(" ", "")
    except Exception:
        return 0
    for g in (7, 6, 5, 4):
        if ("v%d" % g) in kind or ("tpu%d" % g) in kind:
            return g
    return 0


def _default_compute_dtype(gen=None):
    """bf16 VPU chain on v6e/v7x (bf16 VALUs); f32 on v5e / older / unknown."""
    if gen is None:
        gen = _tpu_generation()
    return jnp.bfloat16 if gen >= 6 else jnp.float32


def _vmem_limit_bytes(gen):
    # v5e/v6e: 128 MiB physical VMEM -> 64 MiB scoped limit is comfortable.
    # v7x: only 64 MiB per TensorCore -> stay at 32 MiB.
    return (64 if gen in (5, 6) else 32) * 1024 * 1024


def _choose_tile_n(n, b, gen):
    """Lane-dense N tile (multiple of 128 where possible), generation-aware cap."""
    cap = 4096 if gen >= 7 else (8192 if gen in (5, 6) else 2048)
    if n % 128 == 0:
        tn = min(cap, n)
    elif n <= cap:
        tn = n                    # full extent always satisfies the (8,128) rule
    else:
        tn = cap                  # 128-aligned; Pallas masks the ragged tail block
    # v7x shards "parallel" grid axes across its 2 TensorCores: make sure the
    # grid has at least 2 steps so neither core sits idle.
    if gen >= 7 and b * pl.cdiv(n, tn) < 2:
        if n % 256 == 0:
            tn = n // 2
        elif n > 256:
            tn = ((n + 255) // 256) * 128   # ~half of n, rounded up to 128
        # else: n too small to split while keeping 128-lane-aligned blocks.
    return tn


# ---------------------------------------------------------------------------
# Kernel
# ---------------------------------------------------------------------------

def _pos_embed_kernel(x_ref, w1_ref, t1_ref, w2_ref, b2_ref, o_ref):
    """One (batch, N-tile) block in channels-first layout.

    x_ref:  (1, C_in, TN) bf16   input points, channels-first
    w1_ref: (F, C_in)     cdt    conv1 weight with the BN scale folded in
    t1_ref: (F, 1)        cdt    folded shift = (conv1 bias - mean) * scale + beta
    w2_ref: (F, F)        bf16   conv2 weight
    b2_ref: (F, 1)        f32    conv2 bias
    o_ref:  (1, F, TN)    out_dtype
    (cdt = bf16 on v6e/v7x, f32 on v5e / unknown chips.)
    """
    cdt = w1_ref.dtype
    x = x_ref[0].astype(cdt)                         # (C_in, TN); no-op when bf16
    w1 = w1_ref[...]                                 # (F, C_in)
    c_in = w1.shape[1]

    # Layer 1 (+ folded eval-mode BN): K = C_in (3-4) -> unrolled VPU
    # broadcast-FMAs seeded by the folded shift.  An MXU dot would waste a
    # >=128-deep systolic contraction on K=4 and pay full push/pop latency.
    h = t1_ref[...] + w1[:, 0:1] * x[0:1, :]         # (F, TN)
    for c in range(1, c_in):                         # static, tiny unroll
        h = h + w1[:, c:c + 1] * x[c:c + 1, :]
    h = jnp.maximum(h, 0)                            # ReLU, stays in cdt

    # Layer 2: F x F matmul on the MXU, bf16 operands, f32 accumulation.
    y = jnp.dot(w2_ref[...], h.astype(jnp.bfloat16),
                preferred_element_type=jnp.float32)  # (F, TN)
    y = y + b2_ref[...]
    o_ref[0] = y.astype(o_ref.dtype)


# ---------------------------------------------------------------------------
# Wrapper
# ---------------------------------------------------------------------------

@functools.partial(jax.jit, static_argnames=("compute_dtype", "out_dtype", "tile_n"))
def position_embedding_learned(xyz, params, *, compute_dtype=None,
                               out_dtype=jnp.float32, tile_n=None):
    """xyz: (B, N, C_in) float32.  Returns (B, F, N), matching PyTorch NCL output.

    out_dtype defaults to float32 to match the PyTorch module; pass
    jnp.bfloat16 if downstream consumers tolerate it (halves HBM writeback,
    the dominant traffic at large N).
    """
    B, N, C_in = xyz.shape
    gen = _tpu_generation()
    if compute_dtype is None:
        compute_dtype = _default_compute_dtype(gen)

    w1 = params["w1"].astype(compute_dtype)          # (F, C_in)  BN scale folded in
    t1 = params["t1"].astype(compute_dtype)          # (F, 1)     folded bias+BN shift
    w2 = params["w2"].astype(jnp.bfloat16)           # (F, F)     MXU operand
    b2 = params["b2"].astype(jnp.float32)            # (F, 1)
    F = w1.shape[0]

    # Transpose the INPUT once (C_in = 3-4 channels, ~F/C_in x less data than
    # the output) and cast to bf16.  Being inside the same jit as the
    # pallas_call, the transpose + cast fuse into one HBM round trip.
    x_cfn = jnp.transpose(xyz, (0, 2, 1)).astype(jnp.bfloat16)    # (B, C_in, N)

    if tile_n is None:
        tile_n = _choose_tile_n(N, B, gen)
    elif tile_n < N and tile_n % 128 != 0:
        raise ValueError("tile_n must be a multiple of 128 or >= N")
    tile_n = min(tile_n, N)
    grid = (B, pl.cdiv(N, tile_n))

    out_isz = jnp.dtype(out_dtype).itemsize
    cdt_isz = jnp.dtype(compute_dtype).itemsize
    flops = 2 * B * N * (C_in * F + F * F)
    bytes_accessed = (B * N * C_in * 2                # bf16 input
                      + B * N * F * out_isz           # output
                      + F * C_in * cdt_isz + F * F * 2 + 2 * F * 4)

    return pl.pallas_call(
        _pos_embed_kernel,
        out_shape=jax.ShapeDtypeStruct((B, F, N), out_dtype),
        grid_spec=pltpu.PrefetchScalarGridSpec(
            num_scalar_prefetch=0,
            grid=grid,
            in_specs=[
                pl.BlockSpec((1, C_in, tile_n), lambda b, n: (b, 0, n)),
                # Weights/shift/bias are grid-invariant: constant index_map
                # keeps them resident in VMEM (no per-step re-DMA).
                pl.BlockSpec((F, C_in), lambda b, n: (0, 0)),
                pl.BlockSpec((F, 1), lambda b, n: (0, 0)),
                pl.BlockSpec((F, F), lambda b, n: (0, 0)),
                pl.BlockSpec((F, 1), lambda b, n: (0, 0)),
            ],
            out_specs=pl.BlockSpec((1, F, tile_n), lambda b, n: (b, 0, n)),
        ),
        compiler_params=pltpu.CompilerParams(
            dimension_semantics=("parallel", "parallel"),
            vmem_limit_bytes=_vmem_limit_bytes(gen),
        ),
        cost_estimate=pl.CostEstimate(
            flops=flops, transcendentals=0, bytes_accessed=bytes_accessed),
    )(x_cfn, w1, t1, w2, b2)


# ---------------------------------------------------------------------------
# Parameters & reference
# ---------------------------------------------------------------------------

def init_params(key, input_channel, num_pos_feats, eps=1e-5):
    """Deterministic synthetic parameters matching the nn.Module shapes.

    Eval-mode BatchNorm (running stats + affine) and the conv1 bias are folded
    at parameter-prep time:
        scale = gamma / sqrt(var + eps)
        w1'   = w1 * scale[:, None]
        t1    = (b1 - mean) * scale + beta
    so the kernel runs a single FMA chain seeded by t1 followed by ReLU.
    """
    ks = jax.random.split(key, 8)
    w1 = jax.random.normal(ks[0], (num_pos_feats, input_channel), jnp.float32) * 0.1
    b1 = jax.random.normal(ks[1], (num_pos_feats,), jnp.float32) * 0.1
    gamma = 1.0 + 0.1 * jax.random.normal(ks[2], (num_pos_feats,), jnp.float32)
    beta = 0.1 * jax.random.normal(ks[3], (num_pos_feats,), jnp.float32)
    mean = 0.1 * jax.random.normal(ks[4], (num_pos_feats,), jnp.float32)
    var = jnp.abs(jax.random.normal(ks[5], (num_pos_feats,), jnp.float32)) + 0.5
    w2 = jax.random.normal(ks[6], (num_pos_feats, num_pos_feats), jnp.float32) * 0.1
    b2 = jax.random.normal(ks[7], (num_pos_feats,), jnp.float32) * 0.1

    scale = gamma / jnp.sqrt(var + eps)                       # (F,)
    return {
        "w1": w1 * scale[:, None],                            # (F, C_in) scale folded
        "t1": ((b1 - mean) * scale + beta).reshape(-1, 1),    # (F, 1)
        "w2": w2,                                             # (F, F)
        "b2": b2.reshape(-1, 1),                              # (F, 1)
    }


def _reference(xyz, params, compute_dtype=jnp.float32):
    """Pure-JAX reference mirroring the kernel's dtype/rounding choices."""
    cdt = compute_dtype
    x = jnp.transpose(xyz, (0, 2, 1)).astype(jnp.bfloat16).astype(cdt)   # (B, C, N)
    w1 = params["w1"].astype(cdt)
    t1 = params["t1"].astype(cdt)
    B, C, N = x.shape
    Fd = w1.shape[0]
    h = jnp.broadcast_to(t1[None], (B, Fd, N)).astype(cdt)
    for c in range(C):
        h = h + w1[None, :, c:c + 1] * x[:, c:c + 1, :]
    h = jnp.maximum(h, 0).astype(jnp.bfloat16).astype(jnp.float32)
    w2 = params["w2"].astype(jnp.bfloat16).astype(jnp.float32)
    y = jnp.einsum("fg,bgn->bfn", w2, h,
                   precision=jax.lax.Precision.HIGHEST) + params["b2"][None]
    return y


if __name__ == "__main__":
    key = jax.random.PRNGKey(0)

    # --- Small smoke test at module-consistent shapes -----------------------
    B, N, C_in, F = 2, 16, 4, 32
    k_x, k_p, k_x2 = jax.random.split(key, 3)
    xyz = jax.random.normal(k_x, (B, N, C_in), jnp.float32)
    params = init_params(k_p, C_in, F)

    # 1) Always-available f32 VPU chain, tight tolerance.
    out = jax.block_until_ready(
        position_embedding_learned(xyz, params, compute_dtype=jnp.float32))
    ref = _reference(xyz, params, jnp.float32)
    assert out.shape == (B, F, N), out.shape
    err = float(jnp.max(jnp.abs(out - ref)))
    assert jnp.allclose(out, ref, atol=1e-3, rtol=1e-3), f"f32 path mismatch: {err}"

    # 2) Chip-default path (bf16 VPU chain on v6e/v7x, f32 elsewhere).
    cdt = _default_compute_dtype()
    tol = 1e-3 if cdt == jnp.float32 else 5e-2
    out_d = jax.block_until_ready(position_embedding_learned(xyz, params))
    ref_d = _reference(xyz, params, cdt)
    err_d = float(jnp.max(jnp.abs(out_d - ref_d)))
    assert jnp.allclose(out_d, ref_d, atol=tol, rtol=tol), f"default path mismatch: {err_d}"

    # --- Lane-dense / masked-tail test at a production-like F ---------------
    B2, N2, F2 = 2, 1000, 128            # N2 is not a multiple of 128
    xyz2 = jax.random.normal(k_x2, (B2, N2, C_in), jnp.float32)
    params2 = init_params(k_p, C_in, F2)
    out2 = jax.block_until_ready(
        position_embedding_learned(xyz2, params2, tile_n=512))   # ragged tail block
    ref2 = _reference(xyz2, params2, cdt)
    assert out2.shape == (B2, F2, N2), out2.shape
    err2 = float(jnp.max(jnp.abs(out2 - ref2)))
    assert jnp.allclose(out2, ref2, atol=tol, rtol=tol), f"tiled path mismatch: {err2}"

    print("KERNEL_OK")
</pallas_src>

<mosaic_0001>
module attributes {stable_mosaic.version = 11 : i64} {
  func.func @_pos_embed_kernel(%arg0: i32, %arg1: i32, %arg2: memref<1x4x16xbf16, #tpu.memory_space<vmem>>, %arg3: memref<32x4xf32, #tpu.memory_space<vmem>>, %arg4: memref<32x1xf32, #tpu.memory_space<vmem>>, %arg5: memref<32x32xbf16, #tpu.memory_space<vmem>>, %arg6: memref<32x1xf32, #tpu.memory_space<vmem>>, %arg7: memref<1x32x16xf32, #tpu.memory_space<vmem>>) attributes {dimension_semantics = [#tpu.dimension_semantics<parallel>, #tpu.dimension_semantics<parallel>], iteration_bounds = array<i64: 2, 1>, scalar_prefetch = 0 : i64, scratch_operands = 0 : i64, tpu.core_type = #tpu.core_type<tc>, window_params = [{transform_indices = @transform_0, window_bounds = array<i64: 1, 4, 16>}, {pipeline_mode = #tpu.pipeline_mode<synchronous>, transform_indices = @transform_1, window_bounds = array<i64: 32, 4>}, {pipeline_mode = #tpu.pipeline_mode<synchronous>, transform_indices = @transform_2, window_bounds = array<i64: 32, 1>}, {pipeline_mode = #tpu.pipeline_mode<synchronous>, transform_indices = @transform_3, window_bounds = array<i64: 32, 32>}, {pipeline_mode = #tpu.pipeline_mode<synchronous>, transform_indices = @transform_4, window_bounds = array<i64: 32, 1>}, {transform_indices = @transform_5, window_bounds = array<i64: 1, 32, 16>}]} {
    %c0 = arith.constant 0 : index
    %c0_0 = arith.constant 0 : index
    %c0_1 = arith.constant 0 : index
    %0 = vector.load %arg2[%c0, %c0_0, %c0_1] : memref<1x4x16xbf16, #tpu.memory_space<vmem>>, vector<1x4x16xbf16>
    %1 = vector.shape_cast %0 : vector<1x4x16xbf16> to vector<4x16xbf16>
    %2 = arith.extf %1 : vector<4x16xbf16> to vector<4x16xf32>
    %c0_2 = arith.constant 0 : index
    %c0_3 = arith.constant 0 : index
    %3 = vector.load %arg3[%c0_2, %c0_3] : memref<32x4xf32, #tpu.memory_space<vmem>>, vector<32x4xf32>
    %c0_4 = arith.constant 0 : index
    %c0_5 = arith.constant 0 : index
    %4 = vector.load %arg4[%c0_4, %c0_5] : memref<32x1xf32, #tpu.memory_space<vmem>>, vector<32x1xf32>
    %5 = vector.extract_strided_slice %3 {offsets = [0, 0], sizes = [32, 1], strides = [1, 1]} : vector<32x4xf32> to vector<32x1xf32>
    %6 = vector.extract_strided_slice %2 {offsets = [0, 0], sizes = [1, 16], strides = [1, 1]} : vector<4x16xf32> to vector<1x16xf32>
    %7 = vector.broadcast %5 : vector<32x1xf32> to vector<32x16xf32>
    %8 = vector.broadcast %6 : vector<1x16xf32> to vector<32x16xf32>
    %9 = arith.mulf %7, %8 : vector<32x16xf32>
    %10 = vector.broadcast %4 : vector<32x1xf32> to vector<32x16xf32>
    %11 = arith.addf %10, %9 : vector<32x16xf32>
    %12 = vector.extract_strided_slice %3 {offsets = [0, 1], sizes = [32, 1], strides = [1, 1]} : vector<32x4xf32> to vector<32x1xf32>
    %13 = vector.extract_strided_slice %2 {offsets = [1, 0], sizes = [1, 16], strides = [1, 1]} : vector<4x16xf32> to vector<1x16xf32>
    %14 = vector.broadcast %12 : vector<32x1xf32> to vector<32x16xf32>
    %15 = vector.broadcast %13 : vector<1x16xf32> to vector<32x16xf32>
    %16 = arith.mulf %14, %15 : vector<32x16xf32>
    %17 = arith.addf %11, %16 : vector<32x16xf32>
    %18 = vector.extract_strided_slice %3 {offsets = [0, 2], sizes = [32, 1], strides = [1, 1]} : vector<32x4xf32> to vector<32x1xf32>
    %19 = vector.extract_strided_slice %2 {offsets = [2, 0], sizes = [1, 16], strides = [1, 1]} : vector<4x16xf32> to vector<1x16xf32>
    %20 = vector.broadcast %18 : vector<32x1xf32> to vector<32x16xf32>
    %21 = vector.broadcast %19 : vector<1x16xf32> to vector<32x16xf32>
    %22 = arith.mulf %20, %21 : vector<32x16xf32>
    %23 = arith.addf %17, %22 : vector<32x16xf32>
    %24 = vector.extract_strided_slice %3 {offsets = [0, 3], sizes = [32, 1], strides = [1, 1]} : vector<32x4xf32> to vector<32x1xf32>
    %25 = vector.extract_strided_slice %2 {offsets = [3, 0], sizes = [1, 16], strides = [1, 1]} : vector<4x16xf32> to vector<1x16xf32>
    %26 = vector.broadcast %24 : vector<32x1xf32> to vector<32x16xf32>
    %27 = vector.broadcast %25 : vector<1x16xf32> to vector<32x16xf32>
    %28 = arith.mulf %26, %27 : vector<32x16xf32>
    %29 = arith.addf %23, %28 : vector<32x16xf32>
    %cst = arith.constant 0.000000e+00 : f32
    %30 = vector.broadcast %cst : f32 to vector<32x16xf32>
    %31 = arith.maximumf %29, %30 : vector<32x16xf32>
    %c0_6 = arith.constant 0 : index
    %c0_7 = arith.constant 0 : index
    %32 = vector.load %arg5[%c0_6, %c0_7] : memref<32x32xbf16, #tpu.memory_space<vmem>>, vector<32x32xbf16>
    %33 = arith.truncf %31 : vector<32x16xf32> to vector<32x16xbf16>
    %cst_8 = arith.constant dense<0.000000e+00> : vector<32x16xf32>
    %34 = tpu.matmul %32, %33, %cst_8 {dimension_numbers = #tpu.dot_dimension_numbers<[1], [0], [0], [1], [0, 0, 1, 1], [], []>} : vector<32x32xbf16>, vector<32x16xbf16>, vector<32x16xf32> -> vector<32x16xf32>
    %c0_9 = arith.constant 0 : index
    %c0_10 = arith.constant 0 : index
    %35 = vector.load %arg6[%c0_9, %c0_10] : memref<32x1xf32, #tpu.memory_space<vmem>>, vector<32x1xf32>
    %36 = vector.broadcast %35 : vector<32x1xf32> to vector<32x16xf32>
    %37 = arith.addf %34, %36 : vector<32x16xf32>
    %c0_11 = arith.constant 0 : index
    %c0_12 = arith.constant 0 : index
    %c0_13 = arith.constant 0 : index
    %38 = vector.load %arg7[%c0_11, %c0_12, %c0_13] : memref<1x32x16xf32, #tpu.memory_space<vmem>>, vector<1x32x16xf32>
    %39 = vector.shape_cast %38 : vector<1x32x16xf32> to vector<32x16xf32>
    %40 = vector.shape_cast %37 : vector<32x16xf32> to vector<1x32x16xf32>
    tpu.vector_store %arg7[%c0_11, %c0_12, %c0_13], %40 {strides = array<i32>} : memref<1x32x16xf32, #tpu.memory_space<vmem>>, vector<1x32x16xf32>,
    return
  }
  func.func @transform_0(%arg0: i32, %arg1: i32) -> (i32, i32, i32) {
    %c0_i32 = arith.constant 0 : i32
    %c0_i32_0 = arith.constant 0 : i32
    return %arg0, %c0_i32, %arg1 : i32, i32, i32
  }
  func.func @transform_1(%arg0: i32, %arg1: i32) -> (i32, i32) {
    %c0_i32 = arith.constant 0 : i32
    %c0_i32_0 = arith.constant 0 : i32
    %c0_i32_1 = arith.constant 0 : i32
    return %c0_i32, %c0_i32_0 : i32, i32
  }
  func.func @transform_2(%arg0: i32, %arg1: i32) -> (i32, i32) {
    %c0_i32 = arith.constant 0 : i32
    %c0_i32_0 = arith.constant 0 : i32
    %c0_i32_1 = arith.constant 0 : i32
    return %c0_i32, %c0_i32_0 : i32, i32
  }
  func.func @transform_3(%arg0: i32, %arg1: i32) -> (i32, i32) {
    %c0_i32 = arith.constant 0 : i32
    %c0_i32_0 = arith.constant 0 : i32
    %c0_i32_1 = arith.constant 0 : i32
    return %c0_i32, %c0_i32_0 : i32, i32
  }
  func.func @transform_4(%arg0: i32, %arg1: i32) -> (i32, i32) {
    %c0_i32 = arith.constant 0 : i32
    %c0_i32_0 = arith.constant 0 : i32
    %c0_i32_1 = arith.constant 0 : i32
    return %c0_i32, %c0_i32_0 : i32, i32
  }
  func.func @transform_5(%arg0: i32, %arg1: i32) -> (i32, i32, i32) {
    %c0_i32 = arith.constant 0 : i32
    %c0_i32_0 = arith.constant 0 : i32
    return %arg0, %c0_i32, %arg1 : i32, i32, i32
  }
}

</mosaic_0001>

<llo_original>
// kernel: position_embedding_learned.1
$region0: #{position_embedding_learned.1}
  #allocation0 [shape = 'u32[]', space=smem, size = 0x4, offset = 0x4, fixed_abs, tag = 'smem constant byte address 0x4 - core index']
  #allocation1 [shape = 'u32[144,128]{1,0:T(1,128)}', space=vmem, size = 0x12000, scoped, tag = 'internal scratch']
  %s0 = inlined_call_operand.vmem [shape: bf16[2,4,16], index: 0, kind: input, shape index: {}]
  %s1 = inlined_call_operand.vmem [shape: f32[32,4], index: 1, kind: input, shape index: {}]
  %s2 = inlined_call_operand.vmem [shape: f32[32,1], index: 2, kind: input, shape index: {}]
  %s3 = inlined_call_operand.vmem [shape: bf16[32,32], index: 3, kind: input, shape index: {}]
  %s4 = inlined_call_operand.vmem [shape: f32[32,1], index: 4, kind: input, shape index: {}]
  %s5 = inlined_call_operand.vmem [shape: f32[2,32,16], index: 5, kind: output, shape index: {}]
  %s6 = sld [smem:[#allocation0]]
  $region53: #{position_embedding_learned.1} parent=0
    _
  %s8 = ssub.s32 1, %s6
  %s9 = scalar_select 0, %s8, %s6
  loop: start=0, step=1, limit=4
  $region2: #{position_embedding_learned.1} parent=0 // loop_pre_header
    _
  $region3: #{position_embedding_learned.1} parent=0 // loop_header
    %s11 = sphi 0, %s15
    %p12 = scmp.ge.s32.totalorder %s11, 4
    %s18 = sphi 0, %s30
    %s19 = sphi 0, %s26
    %s20 = sphi 0, %s18
    %s21 = sphi 0, %s19
    %s22 = sphi 0, %s20
    %s23 = sphi 0, %s21
    %s35 = sphi 0, %s37
    %s38 = sphi 0, %s35
    %s39 = sphi 0, %s38
    %s55 = sphi 0, %s39
    %s59 = sphi 0, %s59
    %s61 = sphi 0, %s59
    %s62 = sphi 0, %s61
    %s76 = sphi 0, %s62
    %s80 = sphi 0, %s80
    %s82 = sphi 0, %s80
    %s83 = sphi 0, %s82
    %s97 = sphi 0, %s83
    %s101 = sphi 0, %s101
    %s103 = sphi 0, %s101
    %s104 = sphi 0, %s103
    %s118 = sphi 0, %s104
    %s122 = sphi 0, %s122
    %s124 = sphi 0, %s122
    %s125 = sphi 0, %s124
    %s139 = sphi 0, %s125
    %s147 = sphi 0, %s149
    %s150 = sphi 0, %s147
    %s151 = sphi 0, %s150
    %s167 = sphi 0, %s151
  $region4: #{position_embedding_learned.1} parent=0 // loop_header_branch
    %14 = sbr.rel (%p12) target = $region8
  $region5: #{position_embedding_learned.1} parent=0 // loop_body
    %s16 = ssub.s32 %s11, 1
    %s17 = ssub.s32 %s11, 2
    %s24 = sadd.s32 1, %s19
    %p25 = scmp.ge.s32.totalorder %s24, 1
    %s26 = scalar_select %p25, 0, %s24
    %s27 = sadd.s32 1, %s18
    %s28 = scalar_select %p25, %s27, %s18
    %p29 = scmp.ge.s32.totalorder %s28, 2
    %s30 = scalar_select %p29, 0, %s28
    %s31 = ssub.s32 %s18, %s30
    %s32 = ssub.s32 %s19, %s26
    %s33 = sor.u32 %s31, %s32
    %p34 = scmp.eq.s32.totalorder %s33, 0
    %s36 = sadd.s32 %s35, 1
    %s37 = scalar_select %p34, %s35, %s36
    %p40 = pneg %p34
    %p41 = scmp.eq.s32.totalorder %s11, 1
    %p42 = por %p40, %p41
    %p43 = scmp.ne.s32.totalorder %s35, %s38
    %p44 = scmp.eq.s32.totalorder %s11, 0
    %p45 = por %p43, %p44
    %p46 = scmp.ne.s32.totalorder %s35, %s38
    %p47 = scmp.eq.s32.totalorder %s16, 1
    %p48 = por %p46, %p47
    %p49 = scmp.ne.s32.totalorder %s38, %s39
    %p50 = scmp.eq.s32.totalorder %s16, 0
    %p51 = por %p49, %p50
    %p52 = scmp.ne.s32.totalorder %s38, %s39
    %p53 = scmp.eq.s32.totalorder %s17, 1
    %p54 = por %p52, %p53
    %p56 = scmp.ne.s32.totalorder %s39, %s55
    %p57 = scmp.eq.s32.totalorder %s17, 0
    %p58 = por %p56, %p57
    %s60 = sadd.s32 %s59, 1
    %p63 = scmp.eq.s32.totalorder %s11, 1
    %p64 = scmp.ne.s32.totalorder %s59, %s61
    %p65 = scmp.eq.s32.totalorder %s11, 0
    %p66 = por %p64, %p65
    %p67 = scmp.ne.s32.totalorder %s59, %s61
    %p68 = scmp.eq.s32.totalorder %s16, 1
    %p69 = por %p67, %p68
    %p70 = scmp.ne.s32.totalorder %s61, %s62
    %p71 = scmp.eq.s32.totalorder %s16, 0
    %p72 = por %p70, %p71
    %p73 = scmp.ne.s32.totalorder %s61, %s62
    %p74 = scmp.eq.s32.totalorder %s17, 1
    %p75 = por %p73, %p74
    %p77 = scmp.ne.s32.totalorder %s62, %s76
    %p78 = scmp.eq.s32.totalorder %s17, 0
    %p79 = por %p77, %p78
    %s81 = sadd.s32 %s80, 1
    %p84 = scmp.eq.s32.totalorder %s11, 1
    %p85 = scmp.ne.s32.totalorder %s80, %s82
    %p86 = scmp.eq.s32.totalorder %s11, 0
    %p87 = por %p85, %p86
    %p88 = scmp.ne.s32.totalorder %s80, %s82
    %p89 = scmp.eq.s32.totalorder %s16, 1
    %p90 = por %p88, %p89
    %p91 = scmp.ne.s32.totalorder %s82, %s83
    %p92 = scmp.eq.s32.totalorder %s16, 0
    %p93 = por %p91, %p92
    %p94 = scmp.ne.s32.totalorder %s82, %s83
    %p95 = scmp.eq.s32.totalorder %s17, 1
    %p96 = por %p94, %p95
    %p98 = scmp.ne.s32.totalorder %s83, %s97
    %p99 = scmp.eq.s32.totalorder %s17, 0
    %p100 = por %p98, %p99
    %s102 = sadd.s32 %s101, 1
    %p105 = scmp.eq.s32.totalorder %s11, 1
    %p106 = scmp.ne.s32.totalorder %s101, %s103
    %p107 = scmp.eq.s32.totalorder %s11, 0
    %p108 = por %p106, %p107
    %p109 = scmp.ne.s32.totalorder %s101, %s103
    %p110 = scmp.eq.s32.totalorder %s16, 1
    %p111 = por %p109, %p110
    %p112 = scmp.ne.s32.totalorder %s103, %s104
    %p113 = scmp.eq.s32.totalorder %s16, 0
    %p114 = por %p112, %p113
    %p115 = scmp.ne.s32.totalorder %s103, %s104
    %p116 = scmp.eq.s32.totalorder %s17, 1
    %p117 = por %p115, %p116
    %p119 = scmp.ne.s32.totalorder %s104, %s118
    %p120 = scmp.eq.s32.totalorder %s17, 0
    %p121 = por %p119, %p120
    %s123 = sadd.s32 %s122, 1
    %p126 = scmp.eq.s32.totalorder %s11, 1
    %p127 = scmp.ne.s32.totalorder %s122, %s124
    %p128 = scmp.eq.s32.totalorder %s11, 0
    %p129 = por %p127, %p128
    %p130 = scmp.ne.s32.totalorder %s122, %s124
    %p131 = scmp.eq.s32.totalorder %s16, 1
    %p132 = por %p130, %p131
    %p133 = scmp.ne.s32.totalorder %s124, %s125
    %p134 = scmp.eq.s32.totalorder %s16, 0
    %p135 = por %p133, %p134
    %p136 = scmp.ne.s32.totalorder %s124, %s125
    %p137 = scmp.eq.s32.totalorder %s17, 1
    %p138 = por %p136, %p137
    %p140 = scmp.ne.s32.totalorder %s125, %s139
    %p141 = scmp.eq.s32.totalorder %s17, 0
    %p142 = por %p140, %p141
    %s143 = ssub.s32 %s18, %s30
    %s144 = ssub.s32 %s19, %s26
    %s145 = sor.u32 %s143, %s144
    %p146 = scmp.eq.s32.totalorder %s145, 0
    %s148 = sadd.s32 %s147, 1
    %s149 = scalar_select %p146, %s147, %s148
    %p152 = pneg %p146
    %p153 = scmp.eq.s32.totalorder %s11, 1
    %p154 = por %p152, %p153
    %p155 = scmp.ne.s32.totalorder %s147, %s150
    %p156 = scmp.eq.s32.totalorder %s11, 0
    %p157 = por %p155, %p156
    %p158 = scmp.ne.s32.totalorder %s147, %s150
    %p159 = scmp.eq.s32.totalorder %s16, 1
    %p160 = por %p158, %p159
    %p161 = scmp.ne.s32.totalorder %s150, %s151
    %p162 = scmp.eq.s32.totalorder %s16, 0
    %p163 = por %p161, %p162
    %p164 = scmp.ne.s32.totalorder %s150, %s151
    %p165 = scmp.eq.s32.totalorder %s17, 1
    %p166 = por %p164, %p165
    %p168 = scmp.ne.s32.totalorder %s151, %s167
    %p169 = scmp.eq.s32.totalorder %s17, 0
    %p170 = por %p168, %p169
    %p171 = scmp.le.s32.totalorder 1, %s11
    %p172 = scmp.lt.s32.totalorder %s11, 3
    %p173 = pnand %p171, %p172
    %p174 = pneg %p173
    // Predicated region
    $region9: #{position_embedding_learned.1} parent=5 // pred_check
      _
    $region10: #{position_embedding_learned.1} parent=5 // pred_check_branch
      %176 = sbr.rel (%p173) target = $region12
    $region11: #{position_embedding_learned.1} parent=5 // pred_region
      %s177 = ssub.s32 %s11, 1
      // Predicated region
      $region13: #{position_embedding_learned.1} parent=11 // pred_check
        %p178 = pneg %p72
      $region14: #{position_embedding_learned.1} parent=11 // pred_check_branch
        %180 = sbr.rel (%p178) target = $region16
      $region15: #{position_embedding_learned.1} parent=11 // pred_region
        _
      $region16: #{position_embedding_learned.1} parent=11 // pred_fallthru
        _
      // Predicated region
      $region17: #{position_embedding_learned.1} parent=11 // pred_check
        %p181 = pneg %p93
      $region18: #{position_embedding_learned.1} parent=11 // pred_check_branch
        %183 = sbr.rel (%p181) target = $region20
      $region19: #{position_embedding_learned.1} parent=11 // pred_region
        _
      $region20: #{position_embedding_learned.1} parent=11 // pred_fallthru
        _
      // Predicated region
      $region21: #{position_embedding_learned.1} parent=11 // pred_check
        %p184 = pneg %p114
      $region22: #{position_embedding_learned.1} parent=11 // pred_check_branch
        %186 = sbr.rel (%p184) target = $region24
      $region23: #{position_embedding_learned.1} parent=11 // pred_region
        _
      $region24: #{position_embedding_learned.1} parent=11 // pred_fallthru
        _
      // Predicated region
      $region25: #{position_embedding_learned.1} parent=11 // pred_check
        %p187 = pneg %p135
      $region26: #{position_embedding_learned.1} parent=11 // pred_check_branch
        %189 = sbr.rel (%p187) target = $region28
      $region27: #{position_embedding_learned.1} parent=11 // pred_region
        _
      $region28: #{position_embedding_learned.1} parent=11 // pred_fallthru
        _
    $region12: #{position_embedding_learned.1} parent=5 // pred_fallthru
      _
    %p190 = scmp.lt.s32.totalorder %s11, 2
    // Predicated region
    $region29: #{position_embedding_learned.1} parent=5 // pred_check
      %p191 = pneg %p190
    $region30: #{position_embedding_learned.1} parent=5 // pred_check_branch
      %193 = sbr.rel (%p191) target = $region32
    $region31: #{position_embedding_learned.1} parent=5 // pred_region
      // Predicated region
      $region33: #{position_embedding_learned.1} parent=31 // pred_check
        %p194 = pneg %p45
      $region34: #{position_embedding_learned.1} parent=31 // pred_check_branch
        %196 = sbr.rel (%p194) target = $region36
      $region35: #{position_embedding_learned.1} parent=31 // pred_region
        %p197 = scmp.lt.s32.totalorder %s18, 1
        %s198 = scalar_select %p197, %s18, 1
        %p199 = scmp.lt.s32.totalorder %s19, 0
        %s200 = scalar_select %p199, %s19, 0
        %s201 = sadd.s32 %s200, %s198
        %s202 = smul.addr %s201, 2
        %s203 = scalar_lea.vmem %s0, %s202
      $region36: #{position_embedding_learned.1} parent=31 // pred_fallthru
        _
    $region32: #{position_embedding_learned.1} parent=5 // pred_fallthru
      _
    %p204 = scmp.le.s32.totalorder 1, %s11
    %p205 = scmp.lt.s32.totalorder %s11, 3
    %p206 = pnand %p204, %p205
    %p207 = pneg %p206
    // Predicated region
    $region37: #{position_embedding_learned.1} parent=5 // pred_check
      _
    $region38: #{position_embedding_learned.1} parent=5 // pred_check_branch
      %209 = sbr.rel (%p206) target = $region40
    $region39: #{position_embedding_learned.1} parent=5 // pred_region
      %s210 = ssub.s32 %s11, 1
      %p211 = scmp.lt.s32.totalorder %s20, 1
      %s212 = scalar_select %p211, %s20, 1
      %p213 = scmp.lt.s32.totalorder %s21, 0
      %s214 = scalar_select %p213, %s21, 0
      %s215 = sadd.s32 %s214, %s212
      %s216 = smul.addr %s215, 2
      %s217 = scalar_lea.vmem %s0, %s216
      %p218 = pneg %p51
      %p219 = pneg %p48
      %p220 = pneg %p72
      %p221 = pneg %p69
      %p222 = pneg %p93
      %p223 = pneg %p90
      %p224 = pneg %p114
      %p225 = pneg %p111
      %p226 = pneg %p135
      %p227 = pneg %p132
      %p228 = pneg %p163
      %p229 = pneg %p160
      %p230 = scmp.lt.s32.totalorder %s20, 1
      %s231 = scalar_select %p230, %s20, 1
      %p232 = scmp.lt.s32.totalorder %s21, 0
      %s233 = scalar_select %p232, %s21, 0
      %s234 = smul.addr %s231, 4
      %s235 = sadd.s32 %s233, %s234
      %s236 = smul.addr %s235, 8
      %s237 = scalar_lea.vmem %s5, %s236
      %p238 = scmp.lt.s32.totalorder %s20, 1
      %s239 = scalar_select %p238, %s20, 1
      %p240 = scmp.lt.s32.totalorder %s21, 0
      %s241 = scalar_select %p240, %s21, 0
      %s242 = sadd.s32 %s241, %s239
      %s243 = smul.addr %s242, 2
      %s244 = scalar_lea.vmem %s0, %s243
      %p245 = scmp.lt.s32.totalorder %s20, 1
      %s246 = scalar_select %p245, %s20, 1
      %p247 = scmp.lt.s32.totalorder %s21, 0
      %s248 = scalar_select %p247, %s21, 0
      %s249 = smul.addr %s246, 4
      %s250 = sadd.s32 %s248, %s249
      %s251 = smul.addr %s250, 8
      %s252 = scalar_lea.vmem %s5, %s251
      %v254 = vld [vmem:[%s244] sm:$0x3]
      %v255 = vunpack.c.l.bf16 %v254
      %v256 = vld [vmem:[%s1] sm:$0xff]
      %v257 = vld [vmem:[%s1 + $0x8] sm:$0xff]
      %v258 = vld [vmem:[%s1 + $0x10] sm:$0xff]
      %v259 = vld [vmem:[%s1 + $0x18] sm:$0xff]
      %v260 = vld [vmem:[%s2] sm:$0xff]
      %v261 = vld [vmem:[%s2 + $0x8] sm:$0xff]
      %v262 = vld [vmem:[%s2 + $0x10] sm:$0xff]
      %v263 = vld [vmem:[%s2 + $0x18] sm:$0xff]
      %265 = vset.pattern.permute.xlu0 0
      %266 = vperm.xlu0 %265, %v256
      %v267 = vpop.permute.xlu0 %266
      %270 = vset.pattern.permute.xlu0 0
      %271 = vperm.xlu0 %270, %v257
      %v272 = vpop.permute.xlu0 %271
      %275 = vset.pattern.permute.xlu0 0
      %276 = vperm.xlu0 %275, %v258
      %v277 = vpop.permute.xlu0 %276
      %280 = vset.pattern.permute.xlu0 0
      %281 = vperm.xlu0 %280, %v259
      %v282 = vpop.permute.xlu0 %281
      %v284 = vlaneseq
      %v285 = vshrl.u32 %v284, 7
      %v286 = vsub.s32 0, %v285
      %v287 = vrot.slane %v255, %v286
      %v288 = vmul.f32 %v267, %v287
      %v289 = vmul.f32 %v272, %v287
      %v290 = vmul.f32 %v277, %v287
      %v291 = vmul.f32 %v282, %v287
      %293 = vset.pattern.permute.xlu0 0
      %294 = vperm.xlu0 %293, %v260
      %v295 = vpop.permute.xlu0 %294
      %298 = vset.pattern.permute.xlu0 0
      %299 = vperm.xlu0 %298, %v261
      %v300 = vpop.permute.xlu0 %299
      %303 = vset.pattern.permute.xlu0 0
      %304 = vperm.xlu0 %303, %v262
      %v305 = vpop.permute.xlu0 %304
      %308 = vset.pattern.permute.xlu0 0
      %309 = vperm.xlu0 %308, %v263
      %v310 = vpop.permute.xlu0 %309
      %v312 = vadd.f32 %v295, %v288
      %v313 = vadd.f32 %v300, %v289
      %v314 = vadd.f32 %v305, %v290
      %v315 = vadd.f32 %v310, %v291
      %316 = vset.pattern.permute.xlu0 1
      %317 = vperm.xlu0 %316, %v256
      %v318 = vpop.permute.xlu0 %317
      %320 = vset.pattern.permute.xlu0 1
      %321 = vperm.xlu0 %320, %v257
      %v322 = vpop.permute.xlu0 %321
      %324 = vset.pattern.permute.xlu0 1
      %325 = vperm.xlu0 %324, %v258
      %v326 = vpop.permute.xlu0 %325
      %328 = vset.pattern.permute.xlu0 1
      %329 = vperm.xlu0 %328, %v259
      %v330 = vpop.permute.xlu0 %329
      %v332 = vlaneseq
      %v333 = vshrl.u32 %v332, 7
      %v334 = vsub.s32 1, %v333
      %v335 = vrot.slane %v255, %v334
      %v336 = vmul.f32 %v318, %v335
      %v337 = vmul.f32 %v322, %v335
      %v338 = vmul.f32 %v326, %v335
      %v339 = vmul.f32 %v330, %v335
      %v340 = vadd.f32 %v312, %v336
      %v341 = vadd.f32 %v313, %v337
      %v342 = vadd.f32 %v314, %v338
      %v343 = vadd.f32 %v315, %v339
      %344 = vset.pattern.permute.xlu0 2
      %345 = vperm.xlu0 %344, %v256
      %v346 = vpop.permute.xlu0 %345
      %348 = vset.pattern.permute.xlu0 2
      %349 = vperm.xlu0 %348, %v257
      %v350 = vpop.permute.xlu0 %349
      %352 = vset.pattern.permute.xlu0 2
      %353 = vperm.xlu0 %352, %v258
      %v354 = vpop.permute.xlu0 %353
      %356 = vset.pattern.permute.xlu0 2
      %357 = vperm.xlu0 %356, %v259
      %v358 = vpop.permute.xlu0 %357
      %v360 = vlaneseq
      %v361 = vshrl.u32 %v360, 7
      %v362 = vsub.s32 2, %v361
      %v363 = vrot.slane %v255, %v362
      %v364 = vmul.f32 %v346, %v363
      %v365 = vmul.f32 %v350, %v363
      %v366 = vmul.f32 %v354, %v363
      %v367 = vmul.f32 %v358, %v363
      %v368 = vadd.f32 %v340, %v364
      %v369 = vadd.f32 %v341, %v365
      %v370 = vadd.f32 %v342, %v366
      %v371 = vadd.f32 %v343, %v367
      %372 = vset.pattern.permute.xlu0 3
      %373 = vperm.xlu0 %372, %v256
      %v374 = vpop.permute.xlu0 %373
      %376 = vset.pattern.permute.xlu0 3
      %377 = vperm.xlu0 %376, %v257
      %v378 = vpop.permute.xlu0 %377
      %380 = vset.pattern.permute.xlu0 3
      %381 = vperm.xlu0 %380, %v258
      %v382 = vpop.permute.xlu0 %381
      %384 = vset.pattern.permute.xlu0 3
      %385 = vperm.xlu0 %384, %v259
      %v386 = vpop.permute.xlu0 %385
      %v388 = vlaneseq
      %v389 = vshrl.u32 %v388, 7
      %v390 = vsub.s32 3, %v389
      %v391 = vrot.slane %v255, %v390
      %v392 = vmul.f32 %v374, %v391
      %v393 = vmul.f32 %v378, %v391
      %v394 = vmul.f32 %v382, %v391
      %v395 = vmul.f32 %v386, %v391
      %v396 = vadd.f32 %v368, %v392
      %v397 = vadd.f32 %v369, %v393
      %v398 = vadd.f32 %v370, %v394
      %v399 = vadd.f32 %v371, %v395
      %v400 = vmax.f32 %v396, 0.0
      %v401 = vmax.f32 %v397, 0.0
      %v402 = vmax.f32 %v398, 0.0
      %v403 = vmax.f32 %v399, 0.0
      %v404 = vld [vmem:[%s3] sm:$0xf]
      %v405 = vld [vmem:[%s3 + $0x4] sm:$0xf]
      %v406 = vld [vmem:[%s3 + $0x8] sm:$0xf]
      %v407 = vld [vmem:[%s3 + $0xc] sm:$0xf]
      %v408 = vpack.c.bf16 %v401, %v400
      %v409 = vpack.c.bf16 %v403, %v402
      %v410 = vld [vmem:[%s4] sm:$0xff]
      %v411 = vld [vmem:[%s4 + $0x8] sm:$0xff]
      %v412 = vld [vmem:[%s4 + $0x10] sm:$0xff]
      %v413 = vld [vmem:[%s4 + $0x18] sm:$0xff]
      %415 = vset.pattern.permute.xlu0 0
      %416 = vperm.xlu0 %415, %v410
      %v417 = vpop.permute.xlu0 %416
      %420 = vset.pattern.permute.xlu0 0
      %421 = vperm.xlu0 %420, %v411
      %v422 = vpop.permute.xlu0 %421
      %425 = vset.pattern.permute.xlu0 0
      %426 = vperm.xlu0 %425, %v412
      %v427 = vpop.permute.xlu0 %426
      %430 = vset.pattern.permute.xlu0 0
      %431 = vperm.xlu0 %430, %v413
      %v432 = vpop.permute.xlu0 %431
      %v438 = vunpack.c.l.b16 %v404
      %v439 = vunpack.c.l.b16 %v405
      %v440 = vunpack.c.l.b16 %v406
      %v441 = vunpack.c.l.b16 %v407
      %v442 = vpack.c.b16 %v439, %v438
      %v443 = vpack.c.b16 %v441, %v440
      %vm444 = vcmask 261120
      %v446 = vsel %vm444, %v442, 0
      %v449 = vsel %vm444, %v443, 0
      %451 = vmatprep.subr.bf16.mxu0 0
      %452 = vmatpush1.bf16.msra.mxu0 %v408
      %453 = vmatprep.subr.bf16.mxu0 0
      %454 = vmatpush1.bf16.msra.mxu0 %v409
      %455 = vmatprep.subr.bf16.mxu0 0
      %456 = vmatpush1.bf16.msra.mxu0 0
      %457 = vmatprep.subr.bf16.mxu0 0
      %458 = vmatpush1.bf16.msra.mxu0 0
      %459 = vmatprep.subr.bf16.mxu0 0
      %460 = vmatpush1.bf16.msra.mxu0 0
      %461 = vmatprep.subr.bf16.mxu0 0
      %462 = vmatpush1.bf16.msra.mxu0 0
      %463 = vmatprep.subr.bf16.mxu0 0
      %464 = vmatpush1.bf16.msra.mxu0 0
      %465 = vmatprep.subr.bf16.mxu0 0
      %466 = vmatpush1.bf16.msra.mxu0 0
      %467 = vmatprep.subr.bf16.mxu0 0
      %468 = vmatpush1.bf16.msra.mxu0 0
      %469 = vmatprep.subr.bf16.mxu0 0
      %470 = vmatpush1.bf16.msra.mxu0 0
      %471 = vmatprep.subr.bf16.mxu0 0
      %472 = vmatpush1.bf16.msra.mxu0 0
      %473 = vmatprep.subr.bf16.mxu0 0
      %474 = vmatpush1.bf16.msra.mxu0 0
      %475 = vmatprep.subr.bf16.mxu0 0
      %476 = vmatpush1.bf16.msra.mxu0 0
      %477 = vmatprep.subr.bf16.mxu0 0
      %478 = vmatpush1.bf16.msra.mxu0 0
      %479 = vmatprep.subr.bf16.mxu0 0
      %480 = vmatpush1.bf16.msra.mxu0 0
      %481 = vmatprep.subr.bf16.mxu0 0
      %482 = vmatpush1.bf16.msra.mxu0 0
      %483 = vmatprep.mubr.bf16.mxu0 0
      %484 = vmatmul.mubr.bf16.gmra.mrb[0].mxu0 %v446
      %v485 = vpop.f32.mrb[0].mxu0
      %v486 = vadd.f32 %v417, %v485
      %v487 = vpop.f32.mrb[0].mxu0
      %v488 = vpop.f32.mrb[0].mxu0
      %v489 = vadd.f32 %v422, %v488
      %v490 = vpop.f32.mrb[0].mxu0
      %491 = vmatprep.mubr.bf16.mxu0 0
      %492 = vmatmul.mubr.bf16.gmra.mrb[0].mxu0 %v449
      %v493 = vpop.f32.mrb[0].mxu0
      %v494 = vadd.f32 %v427, %v493
      %v495 = vpop.f32.mrb[0].mxu0
      %v496 = vpop.f32.mrb[0].mxu0
      %v497 = vadd.f32 %v432, %v496
      %v498 = vpop.f32.mrb[0].mxu0
      %499 = vdwg.mxu0
      %vm500 = vcmask 130048
      %501 = vst.msk [vmem:[%s252] sm:$0xff] %vm500, %v486
      %502 = vst.msk [vmem:[%s252 + $0x8] sm:$0xff] %vm500, %v489
      %503 = vst.msk [vmem:[%s252 + $0x10] sm:$0xff] %vm500, %v494
      %504 = vst.msk [vmem:[%s252 + $0x18] sm:$0xff] %vm500, %v497
      %p505 = scmp.lt.s32.totalorder %s20, 1
      %s506 = scalar_select %p505, %s20, 1
      %p507 = scmp.lt.s32.totalorder %s21, 0
      %s508 = scalar_select %p507, %s21, 0
      %s509 = smul.addr %s506, 4
      %s510 = sadd.s32 %s508, %s509
      %s511 = smul.addr %s510, 8
      %s512 = scalar_lea.vmem %s5, %s511
      // Predicated region
      $region41: #{position_embedding_learned.1} parent=39 // pred_check
        %p513 = pneg %p160
      $region42: #{position_embedding_learned.1} parent=39 // pred_check_branch
        %515 = sbr.rel (%p513) target = $region44
      $region43: #{position_embedding_learned.1} parent=39 // pred_region
        _
      $region44: #{position_embedding_learned.1} parent=39 // pred_fallthru
        _
    $region40: #{position_embedding_learned.1} parent=5 // pred_fallthru
      _
    %p516 = scmp.le.s32.totalorder 2, %s11
    // Predicated region
    $region45: #{position_embedding_learned.1} parent=5 // pred_check
      %p517 = pneg %p516
    $region46: #{position_embedding_learned.1} parent=5 // pred_check_branch
      %519 = sbr.rel (%p517) target = $region48
    $region47: #{position_embedding_learned.1} parent=5 // pred_region
      %s520 = ssub.s32 %s11, 2
      // Predicated region
      $region49: #{position_embedding_learned.1} parent=47 // pred_check
        %p521 = pneg %p166
      $region50: #{position_embedding_learned.1} parent=47 // pred_check_branch
        %523 = sbr.rel (%p521) target = $region52
      $region51: #{position_embedding_learned.1} parent=47 // pred_region
        %p524 = scmp.lt.s32.totalorder %s22, 1
        %s525 = scalar_select %p524, %s22, 1
        %p526 = scmp.lt.s32.totalorder %s23, 0
        %s527 = scalar_select %p526, %s23, 0
        %s528 = smul.addr %s525, 4
        %s529 = sadd.s32 %s527, %s528
        %s530 = smul.addr %s529, 8
        %s531 = scalar_lea.vmem %s5, %s530
      $region52: #{position_embedding_learned.1} parent=47 // pred_fallthru
        _
    $region48: #{position_embedding_learned.1} parent=5 // pred_fallthru
      _
  $region6: #{position_embedding_learned.1} parent=0 // loop_footer
    %s15 = sadd.s32 1, %s11
  $region7: #{position_embedding_learned.1} parent=0 // loop_footer_branch
    %10 = sbr.rel target = $region3
  $region8: #{position_embedding_learned.1} parent=0 // loop_exit
    _

</llo_original>
